<compile_context>
chip_gen: v5e
topology: v5e:2x2
jax: 0.10.0
libtpu: 0.0.40
codegen_flags: <defaults>
</compile_context>

<pallas_src>
import functools

import jax
import jax.numpy as jnp
from jax.experimental import pallas as pl
from jax.experimental.pallas import tpu as pltpu


def _soft_dice_partial_kernel(logits_ref, labels_ref, inter_ref, union_ref, *,
                              num_classes, tile_rows, tiles_per_shard,
                              valid_rows, needs_mask):
    """One (batch, shard, h-tile) grid step.

    logits_ref: (C, TH, W) float32      labels_ref: (TH, W) int
    inter_ref / union_ref: (C, W) float32 -- lane-parallel resident accumulators
    """
    s = pl.program_id(1)
    t = pl.program_id(2)

    @pl.when(t == 0)
    def _():
        inter_ref[...] = jnp.zeros_like(inter_ref)
        union_ref[...] = jnp.zeros_like(union_ref)

    labels = labels_ref[...]                      # (TH, W)
    th, w = labels.shape

    if needs_mask:
        # Global row index of each sublane in this (possibly ragged or
        # duplicate-read) tile; rows >= H contribute nothing.
        h_start = (s * tiles_per_shard + t) * tile_rows
        row = jax.lax.broadcasted_iota(jnp.int32, (th, w), 0)
        valid = (h_start + row) < valid_rows      # (TH, W) bool
    else:
        valid = None

    inter_parts = []
    union_parts = []
    # Python-unrolled over the tiny class axis: scalar compares, mask reused
    # for both partial sums (no (C, TILE) iota / sublane broadcast per step).
    for c in range(num_classes):
        p = logits_ref[c].astype(jnp.float32)     # (TH, W)
        m = labels == c                           # (TH, W) bool
        if valid is not None:
            p = jnp.where(valid, p, 0.0)
            m = jnp.logical_and(m, valid)
        mf = m.astype(jnp.float32)
        # Reduce over sublanes only; the lane axis stays parallel and is summed
        # once in the JAX epilogue (keeps the steady-state loop VALU-only).
        inter_parts.append(jnp.sum(jnp.where(m, p, 0.0), axis=0))   # (W,)
        union_parts.append(jnp.sum(p + mf, axis=0))                 # (W,)

    inter_ref[...] += jnp.stack(inter_parts, axis=0)                # (C, W)
    union_ref[...] += jnp.stack(union_parts, axis=0)


def soft_dice_loss(logits, labels, class_weights, smooth=1.0, *,
                   tile_rows=None, vmem_block_budget_bytes=24 * 1024 * 1024):
    """logits: (N, C, H, W) float, labels: (N, H, W) int, class_weights: (C,)."""
    N, C, H, W = logits.shape
    assert labels.shape == (N, H, W)

    if not jnp.issubdtype(labels.dtype, jnp.integer):
        labels = labels.astype(jnp.int32)

    # ---- choose the H tile (rows -> sublanes, full W -> lanes) -------------
    if tile_rows is None:
        lane_w = pl.cdiv(W, 128) * 128            # VMEM lane padding of a row
        bytes_per_row = lane_w * (C * logits.dtype.itemsize
                                  + labels.dtype.itemsize)
        # logits+labels blocks, double-buffered, must fit the byte budget.
        tile_rows = vmem_block_budget_bytes // (2 * bytes_per_row)
    if tile_rows >= H:
        tile_rows = H                             # full-dim block: always legal
    else:
        tile_rows = max(8, (tile_rows // 8) * 8)  # sublane multiple

    num_h_tiles = pl.cdiv(H, tile_rows)
    # Megacore sharding independent of batch size (v7x has 2 TensorCores).
    num_shards = 2 if num_h_tiles >= 2 else 1
    tiles_per_shard = pl.cdiv(num_h_tiles, num_shards)
    even_split = num_shards * tiles_per_shard == num_h_tiles
    needs_mask = (H % tile_rows != 0) or (not even_split)

    def h_block(s, t):
        idx = s * tiles_per_shard + t
        if not even_split:
            # Out-of-range steps re-read the last real tile (in-bounds DMA);
            # the kernel's row mask zeroes their contribution.
            idx = jnp.minimum(idx, num_h_tiles - 1)
        return idx

    kernel = functools.partial(
        _soft_dice_partial_kernel,
        num_classes=C, tile_rows=tile_rows, tiles_per_shard=tiles_per_shard,
        valid_rows=H, needs_mask=needs_mask)

    cost = pl.CostEstimate(
        flops=6 * N * C * H * W,
        transcendentals=0,
        bytes_accessed=(N * C * H * W * logits.dtype.itemsize
                        + N * H * W * labels.dtype.itemsize
                        + 2 * N * num_shards * C * W * 4))

    inter, union = pl.pallas_call(
        kernel,
        out_shape=(jax.ShapeDtypeStruct((N, num_shards, C, W), jnp.float32),
                   jax.ShapeDtypeStruct((N, num_shards, C, W), jnp.float32)),
        grid=(N, num_shards, tiles_per_shard),
        in_specs=[
            pl.BlockSpec((None, C, tile_rows, W),
                         lambda n, s, t: (n, 0, h_block(s, t), 0)),
            pl.BlockSpec((None, tile_rows, W),
                         lambda n, s, t: (n, h_block(s, t), 0)),
        ],
        out_specs=(
            pl.BlockSpec((None, None, C, W), lambda n, s, t: (n, s, 0, 0)),
            pl.BlockSpec((None, None, C, W), lambda n, s, t: (n, s, 0, 0)),
        ),
        compiler_params=pltpu.CompilerParams(
            dimension_semantics=("parallel", "parallel", "arbitrary"),
            # ~24 MiB of double-buffered blocks + outputs; 48 MiB leaves
            # headroom yet stays under v7x's 64 MiB physical VMEM.
            vmem_limit_bytes=48 * 1024 * 1024),
        cost_estimate=cost,
    )(logits, labels)

    # Tiny O(C) epilogue in plain JAX, mirroring the module exactly.
    inter = jnp.sum(inter, axis=(0, 1, 3))        # (C,)
    union = jnp.sum(union, axis=(0, 1, 3))        # (C,)
    dice = (2.0 * inter + smooth) / (union + smooth)
    w = jnp.asarray(class_weights, dtype=dice.dtype)
    weighted = jnp.dot(w, dice)                   # == w0*d0 + w1*d1 + w2*d2 for C == 3
    return 1.0 - weighted


def _reference_loss(logits, labels, class_weights, smooth=1.0):
    # Plain-JAX reference mirroring the PyTorch loop.
    C = logits.shape[1]
    dices = []
    for c in range(C):
        probs = logits[:, c]
        mask = (labels == c).astype(logits.dtype)
        inter = jnp.sum(probs * mask)
        union = jnp.sum(probs) + jnp.sum(mask)
        dices.append((2.0 * inter + smooth) / (union + smooth))
    dices = jnp.stack(dices)
    weighted = (class_weights[0] * dices[0]
                + class_weights[1] * dices[1]
                + class_weights[2] * dices[2])
    return 1.0 - weighted


if __name__ == "__main__":
    key = jax.random.PRNGKey(0)
    k1, k2, k3, k4, k5, k6 = jax.random.split(key, 6)
    class_weights = jnp.array([0.2, 0.3, 0.5], dtype=jnp.float32)
    C = 3

    # case 1: multi-step accumulation + 2-way spatial shard (H=32 -> 4 tiles of 8 rows)
    N, H, W = 2, 3, 16
    N, H, W = 2, 32, 16
    logits = jax.random.uniform(k1, (N, C, H, W), dtype=jnp.float32)
    labels = jax.random.randint(k2, (N, H, W), 0, C, dtype=jnp.int32)
    loss = jax.block_until_ready(
        soft_dice_loss(logits, labels, class_weights, smooth=1.0, tile_rows=8))
    ref = _reference_loss(logits, labels, class_weights, smooth=1.0)
    assert jnp.allclose(loss, ref, atol=1e-5, rtol=1e-5), (loss, ref)

    # case 2: ragged H (20 % 8 != 0) and odd tile count (3) -> in-kernel masking
    #         of both the ragged rows and the clamped duplicate shard tile.
    N2, H2, W2 = 2, 20, 20
    logits2 = jax.random.uniform(k3, (N2, C, H2, W2), dtype=jnp.float32)
    labels2 = jax.random.randint(k4, (N2, H2, W2), 0, C, dtype=jnp.int32)
    loss2 = jax.block_until_ready(
        soft_dice_loss(logits2, labels2, class_weights, smooth=1.0, tile_rows=8))
    ref2 = _reference_loss(logits2, labels2, class_weights, smooth=1.0)
    assert jnp.allclose(loss2, ref2, atol=1e-5, rtol=1e-5), (loss2, ref2)

    # case 3: default (auto) tile size -> single full-H tile, N=1, single shard
    N3, H3, W3 = 1, 16, 16
    logits3 = jax.random.uniform(k5, (N3, C, H3, W3), dtype=jnp.float32)
    labels3 = jax.random.randint(k6, (N3, H3, W3), 0, C, dtype=jnp.int32)
    loss3 = jax.block_until_ready(
        soft_dice_loss(logits3, labels3, class_weights, smooth=1.0))
    ref3 = _reference_loss(logits3, labels3, class_weights, smooth=1.0)
    assert jnp.allclose(loss3, ref3, atol=1e-5, rtol=1e-5), (loss3, ref3)

    print("KERNEL_OK")
</pallas_src>

<mosaic_0001>
module attributes {stable_mosaic.version = 11 : i64} {
  func.func @_soft_dice_partial_kernel(%arg0: i32, %arg1: i32, %arg2: i32, %arg3: memref<1x3x8x16xf32, #tpu.memory_space<vmem>>, %arg4: memref<1x8x16xi32, #tpu.memory_space<vmem>>, %arg5: memref<1x1x3x16xf32, #tpu.memory_space<vmem>>, %arg6: memref<1x1x3x16xf32, #tpu.memory_space<vmem>>) attributes {dimension_semantics = [#tpu.dimension_semantics<parallel>, #tpu.dimension_semantics<parallel>, #tpu.dimension_semantics<arbitrary>], iteration_bounds = array<i64: 2, 2, 2>, scalar_prefetch = 0 : i64, scratch_operands = 0 : i64, tpu.core_type = #tpu.core_type<tc>, window_params = [{transform_indices = @transform_0, window_bounds = array<i64: 1, 3, 8, 16>}, {transform_indices = @transform_1, window_bounds = array<i64: 1, 8, 16>}, {transform_indices = @transform_2, window_bounds = array<i64: 1, 1, 3, 16>}, {transform_indices = @transform_3, window_bounds = array<i64: 1, 1, 3, 16>}]} {
    %c0_i32 = arith.constant 0 : i32
    %0 = arith.cmpi eq, %arg2, %c0_i32 : i32
    %1 = arith.extui %0 : i1 to i32
    %c0_i32_0 = arith.constant 0 : i32
    %2 = arith.cmpi ne, %1, %c0_i32_0 : i32
    scf.if %2 {
      %cst_38 = arith.constant 0.000000e+00 : f32
      %58 = vector.broadcast %cst_38 : f32 to vector<3x16xf32>
      %c0_39 = arith.constant 0 : index
      %c0_40 = arith.constant 0 : index
      %c0_41 = arith.constant 0 : index
      %c0_42 = arith.constant 0 : index
      %59 = vector.load %arg5[%c0_39, %c0_40, %c0_41, %c0_42] : memref<1x1x3x16xf32, #tpu.memory_space<vmem>>, vector<1x1x3x16xf32>
      %60 = vector.shape_cast %59 : vector<1x1x3x16xf32> to vector<3x16xf32>
      %61 = vector.shape_cast %58 : vector<3x16xf32> to vector<1x1x3x16xf32>
      tpu.vector_store %arg5[%c0_39, %c0_40, %c0_41, %c0_42], %61 {strides = array<i32>} : memref<1x1x3x16xf32, #tpu.memory_space<vmem>>, vector<1x1x3x16xf32>,
      %cst_43 = arith.constant 0.000000e+00 : f32
      %62 = vector.broadcast %cst_43 : f32 to vector<3x16xf32>
      %c0_44 = arith.constant 0 : index
      %c0_45 = arith.constant 0 : index
      %c0_46 = arith.constant 0 : index
      %c0_47 = arith.constant 0 : index
      %63 = vector.load %arg6[%c0_44, %c0_45, %c0_46, %c0_47] : memref<1x1x3x16xf32, #tpu.memory_space<vmem>>, vector<1x1x3x16xf32>
      %64 = vector.shape_cast %63 : vector<1x1x3x16xf32> to vector<3x16xf32>
      %65 = vector.shape_cast %62 : vector<3x16xf32> to vector<1x1x3x16xf32>
      tpu.vector_store %arg6[%c0_44, %c0_45, %c0_46, %c0_47], %65 {strides = array<i32>} : memref<1x1x3x16xf32, #tpu.memory_space<vmem>>, vector<1x1x3x16xf32>,
    } else {
    }
    %c0 = arith.constant 0 : index
    %c0_1 = arith.constant 0 : index
    %c0_2 = arith.constant 0 : index
    %3 = vector.load %arg4[%c0, %c0_1, %c0_2] : memref<1x8x16xi32, #tpu.memory_space<vmem>>, vector<1x8x16xi32>
    %4 = vector.shape_cast %3 : vector<1x8x16xi32> to vector<8x16xi32>
    %c0_3 = arith.constant 0 : index
    %c0_4 = arith.constant 0 : index
    %c0_5 = arith.constant 0 : index
    %c0_6 = arith.constant 0 : index
    %5 = vector.load %arg3[%c0_3, %c0_4, %c0_5, %c0_6] : memref<1x3x8x16xf32, #tpu.memory_space<vmem>>, vector<1x1x8x16xf32>
    %6 = vector.shape_cast %5 : vector<1x1x8x16xf32> to vector<8x16xf32>
    %c0_i32_7 = arith.constant 0 : i32
    %7 = vector.broadcast %c0_i32_7 : i32 to vector<8x16xi32>
    %8 = arith.cmpi eq, %4, %7 : vector<8x16xi32>
    %9 = arith.extui %8 : vector<8x16xi1> to vector<8x16xi32>
    %10 = arith.sitofp %9 : vector<8x16xi32> to vector<8x16xf32>
    %cst = arith.constant 0.000000e+00 : f32
    %11 = vector.broadcast %cst : f32 to vector<8x16xf32>
    %12 = arith.select %8, %6, %11 : vector<8x16xi1>, vector<8x16xf32>
    %cst_8 = arith.constant dense<0.000000e+00> : vector<16xf32>
    %13 = vector.multi_reduction <add>, %12, %cst_8 [0] : vector<8x16xf32> to vector<16xf32>
    %14 = arith.addf %6, %10 : vector<8x16xf32>
    %cst_9 = arith.constant dense<0.000000e+00> : vector<16xf32>
    %15 = vector.multi_reduction <add>, %14, %cst_9 [0] : vector<8x16xf32> to vector<16xf32>
    %c0_10 = arith.constant 0 : index
    %c1 = arith.constant 1 : index
    %c0_11 = arith.constant 0 : index
    %c0_12 = arith.constant 0 : index
    %16 = vector.load %arg3[%c0_10, %c1, %c0_11, %c0_12] : memref<1x3x8x16xf32, #tpu.memory_space<vmem>>, vector<1x1x8x16xf32>
    %17 = vector.shape_cast %16 : vector<1x1x8x16xf32> to vector<8x16xf32>
    %c1_i32 = arith.constant 1 : i32
    %18 = vector.broadcast %c1_i32 : i32 to vector<8x16xi32>
    %19 = arith.cmpi eq, %4, %18 : vector<8x16xi32>
    %20 = arith.extui %19 : vector<8x16xi1> to vector<8x16xi32>
    %21 = arith.sitofp %20 : vector<8x16xi32> to vector<8x16xf32>
    %cst_13 = arith.constant 0.000000e+00 : f32
    %22 = vector.broadcast %cst_13 : f32 to vector<8x16xf32>
    %23 = arith.select %19, %17, %22 : vector<8x16xi1>, vector<8x16xf32>
    %cst_14 = arith.constant dense<0.000000e+00> : vector<16xf32>
    %24 = vector.multi_reduction <add>, %23, %cst_14 [0] : vector<8x16xf32> to vector<16xf32>
    %25 = arith.addf %17, %21 : vector<8x16xf32>
    %cst_15 = arith.constant dense<0.000000e+00> : vector<16xf32>
    %26 = vector.multi_reduction <add>, %25, %cst_15 [0] : vector<8x16xf32> to vector<16xf32>
    %c0_16 = arith.constant 0 : index
    %c2 = arith.constant 2 : index
    %c0_17 = arith.constant 0 : index
    %c0_18 = arith.constant 0 : index
    %27 = vector.load %arg3[%c0_16, %c2, %c0_17, %c0_18] : memref<1x3x8x16xf32, #tpu.memory_space<vmem>>, vector<1x1x8x16xf32>
    %28 = vector.shape_cast %27 : vector<1x1x8x16xf32> to vector<8x16xf32>
    %c2_i32 = arith.constant 2 : i32
    %29 = vector.broadcast %c2_i32 : i32 to vector<8x16xi32>
    %30 = arith.cmpi eq, %4, %29 : vector<8x16xi32>
    %31 = arith.extui %30 : vector<8x16xi1> to vector<8x16xi32>
    %32 = arith.sitofp %31 : vector<8x16xi32> to vector<8x16xf32>
    %cst_19 = arith.constant 0.000000e+00 : f32
    %33 = vector.broadcast %cst_19 : f32 to vector<8x16xf32>
    %34 = arith.select %30, %28, %33 : vector<8x16xi1>, vector<8x16xf32>
    %cst_20 = arith.constant dense<0.000000e+00> : vector<16xf32>
    %35 = vector.multi_reduction <add>, %34, %cst_20 [0] : vector<8x16xf32> to vector<16xf32>
    %36 = arith.addf %28, %32 : vector<8x16xf32>
    %cst_21 = arith.constant dense<0.000000e+00> : vector<16xf32>
    %37 = vector.multi_reduction <add>, %36, %cst_21 [0] : vector<8x16xf32> to vector<16xf32>
    %c0_22 = arith.constant 0 : index
    %c0_23 = arith.constant 0 : index
    %c0_24 = arith.constant 0 : index
    %c0_25 = arith.constant 0 : index
    %38 = vector.load %arg5[%c0_22, %c0_23, %c0_24, %c0_25] : memref<1x1x3x16xf32, #tpu.memory_space<vmem>>, vector<1x1x3x16xf32>
    %39 = vector.shape_cast %38 : vector<1x1x3x16xf32> to vector<3x16xf32>
    %40 = vector.shape_cast %13 : vector<16xf32> to vector<1x16xf32>
    %41 = vector.shape_cast %24 : vector<16xf32> to vector<1x16xf32>
    %42 = vector.shape_cast %35 : vector<16xf32> to vector<1x16xf32>
    %43 = tpu.concatenate %40, %41, %42 in 0 : vector<1x16xf32>, vector<1x16xf32>, vector<1x16xf32> -> vector<3x16xf32>
    %44 = arith.addf %39, %43 : vector<3x16xf32>
    %c0_26 = arith.constant 0 : index
    %c0_27 = arith.constant 0 : index
    %c0_28 = arith.constant 0 : index
    %c0_29 = arith.constant 0 : index
    %45 = vector.load %arg5[%c0_26, %c0_27, %c0_28, %c0_29] : memref<1x1x3x16xf32, #tpu.memory_space<vmem>>, vector<1x1x3x16xf32>
    %46 = vector.shape_cast %45 : vector<1x1x3x16xf32> to vector<3x16xf32>
    %47 = vector.shape_cast %44 : vector<3x16xf32> to vector<1x1x3x16xf32>
    tpu.vector_store %arg5[%c0_26, %c0_27, %c0_28, %c0_29], %47 {strides = array<i32>} : memref<1x1x3x16xf32, #tpu.memory_space<vmem>>, vector<1x1x3x16xf32>,
    %c0_30 = arith.constant 0 : index
    %c0_31 = arith.constant 0 : index
    %c0_32 = arith.constant 0 : index
    %c0_33 = arith.constant 0 : index
    %48 = vector.load %arg6[%c0_30, %c0_31, %c0_32, %c0_33] : memref<1x1x3x16xf32, #tpu.memory_space<vmem>>, vector<1x1x3x16xf32>
    %49 = vector.shape_cast %48 : vector<1x1x3x16xf32> to vector<3x16xf32>
    %50 = vector.shape_cast %15 : vector<16xf32> to vector<1x16xf32>
    %51 = vector.shape_cast %26 : vector<16xf32> to vector<1x16xf32>
    %52 = vector.shape_cast %37 : vector<16xf32> to vector<1x16xf32>
    %53 = tpu.concatenate %50, %51, %52 in 0 : vector<1x16xf32>, vector<1x16xf32>, vector<1x16xf32> -> vector<3x16xf32>
    %54 = arith.addf %49, %53 : vector<3x16xf32>
    %c0_34 = arith.constant 0 : index
    %c0_35 = arith.constant 0 : index
    %c0_36 = arith.constant 0 : index
    %c0_37 = arith.constant 0 : index
    %55 = vector.load %arg6[%c0_34, %c0_35, %c0_36, %c0_37] : memref<1x1x3x16xf32, #tpu.memory_space<vmem>>, vector<1x1x3x16xf32>
    %56 = vector.shape_cast %55 : vector<1x1x3x16xf32> to vector<3x16xf32>
    %57 = vector.shape_cast %54 : vector<3x16xf32> to vector<1x1x3x16xf32>
    tpu.vector_store %arg6[%c0_34, %c0_35, %c0_36, %c0_37], %57 {strides = array<i32>} : memref<1x1x3x16xf32, #tpu.memory_space<vmem>>, vector<1x1x3x16xf32>,
    return
  }
  func.func @transform_0(%arg0: i32, %arg1: i32, %arg2: i32) -> (i32, i32, i32, i32) {
    %c2_i32 = arith.constant 2 : i32
    %0 = arith.muli %arg1, %c2_i32 : i32
    %1 = arith.addi %0, %arg2 : i32
    %c0_i32 = arith.constant 0 : i32
    %c0_i32_0 = arith.constant 0 : i32
    %c0_i32_1 = arith.constant 0 : i32
    return %arg0, %c0_i32, %1, %c0_i32_0 : i32, i32, i32, i32
  }
  func.func @transform_1(%arg0: i32, %arg1: i32, %arg2: i32) -> (i32, i32, i32) {
    %c2_i32 = arith.constant 2 : i32
    %0 = arith.muli %arg1, %c2_i32 : i32
    %1 = arith.addi %0, %arg2 : i32
    %c0_i32 = arith.constant 0 : i32
    %c0_i32_0 = arith.constant 0 : i32
    return %arg0, %1, %c0_i32 : i32, i32, i32
  }
  func.func @transform_2(%arg0: i32, %arg1: i32, %arg2: i32) -> (i32, i32, i32, i32) {
    %c0_i32 = arith.constant 0 : i32
    %c0_i32_0 = arith.constant 0 : i32
    %c0_i32_1 = arith.constant 0 : i32
    return %arg0, %arg1, %c0_i32, %c0_i32_0 : i32, i32, i32, i32
  }
  func.func @transform_3(%arg0: i32, %arg1: i32, %arg2: i32) -> (i32, i32, i32, i32) {
    %c0_i32 = arith.constant 0 : i32
    %c0_i32_0 = arith.constant 0 : i32
    %c0_i32_1 = arith.constant 0 : i32
    return %arg0, %arg1, %c0_i32, %c0_i32_0 : i32, i32, i32, i32
  }
}

</mosaic_0001>

<llo_original>
// kernel: tpu_custom_call.1
$region0: #{tpu_custom_call.1}
  #allocation0 [shape = 'u32[]', space=smem, size = 0x4, offset = 0x4, fixed_abs, tag = 'smem constant byte address 0x4 - core index']
  #allocation1 [shape = 'u32[72,128]{1,0:T(1,128)}', space=vmem, size = 0x9000, scoped, tag = 'internal scratch']
  %s0 = inlined_call_operand.vmem [shape: f32[2,3,32,16], index: 0, kind: input, shape index: {}]
  %s1 = inlined_call_operand.vmem [shape: s32[2,32,16], index: 1, kind: input, shape index: {}]
  %s2 = inlined_call_operand.vmem [shape: f32[2,2,3,16], index: 2, kind: output, shape index: {0}]
  %s3 = inlined_call_operand.vmem [shape: f32[2,2,3,16], index: 3, kind: output, shape index: {1}]
  %4 = xla_tuple %s2, %s3
  %s5 = sld [smem:[#allocation0]]
  $region91: #{tpu_custom_call.1} parent=0
    _
  %s7 = ssub.s32 1, %s5
  %s8 = scalar_select 0, %s7, %s5
  $region1: #{tpu_custom_call.1} parent=0
    #allocation2 [shape = 'u8[24576]{0}', space=vmem, size = 0x6000, scoped, tag = 'input window, operand 0']
    loop: start=0, step=1, limit=10
    $region2: #{tpu_custom_call.1} parent=1 // loop_pre_header
      _
    $region3: #{tpu_custom_call.1} parent=1 // loop_header
      %s10 = sphi 0, %s14
      %p11 = scmp.ge.s32.totalorder %s10, 10
      %s17 = sphi 0, %s36
      %s18 = sphi 0, %s32
      %s19 = sphi 0, %s28
      %s20 = sphi 0, %s17
      %s21 = sphi 0, %s18
      %s22 = sphi 0, %s19
      %s23 = sphi 0, %s20
      %s24 = sphi 0, %s21
      %s25 = sphi 0, %s22
      %s45 = sphi 0, %s47
      %s48 = sphi 0, %s45
      %s49 = sphi 0, %s48
      %s65 = sphi 0, %s49
      %s77 = sphi 0, %s79
      %s80 = sphi 0, %s77
      %s81 = sphi 0, %s80
      %s97 = sphi 0, %s81
      %s105 = sphi 0, %s107
      %s108 = sphi 0, %s105
      %s109 = sphi 0, %s108
      %s125 = sphi 0, %s109
      %s133 = sphi 0, %s135
      %s136 = sphi 0, %s133
      %s137 = sphi 0, %s136
      %s153 = sphi 0, %s137
    $region4: #{tpu_custom_call.1} parent=1 // loop_header_branch
      %13 = sbr.rel (%p11) target = $region8
    $region5: #{tpu_custom_call.1} parent=1 // loop_body
      %s15 = ssub.s32 %s10, 1
      %s16 = ssub.s32 %s10, 2
      %s26 = sadd.s32 1, %s19
      %p27 = scmp.ge.s32.totalorder %s26, 2
      %s28 = scalar_select %p27, 0, %s26
      %s29 = sadd.s32 1, %s18
      %s30 = scalar_select %p27, %s29, %s18
      %p31 = scmp.ge.s32.totalorder %s30, 2
      %s32 = scalar_select %p31, 0, %s30
      %s33 = sadd.s32 1, %s17
      %s34 = scalar_select %p31, %s33, %s17
      %p35 = scmp.ge.s32.totalorder %s34, 2
      %s36 = scalar_select %p35, 0, %s34
      %s37 = smul.u32 %s18, 2
      %s38 = sadd.s32 %s37, %s19
      %s39 = smul.u32 %s32, 2
      %s40 = sadd.s32 %s39, %s28
      %s41 = ssub.s32 %s17, %s36
      %s42 = ssub.s32 %s38, %s40
      %s43 = sor.u32 %s41, %s42
      %p44 = scmp.eq.s32.totalorder %s43, 0
      %s46 = sadd.s32 %s45, 1
      %s47 = scalar_select %p44, %s45, %s46
      %p50 = pneg %p44
      %p51 = scmp.eq.s32.totalorder %s10, 7
      %p52 = por %p50, %p51
      %p53 = scmp.ne.s32.totalorder %s45, %s48
      %p54 = scmp.eq.s32.totalorder %s10, 0
      %p55 = por %p53, %p54
      %p56 = scmp.ne.s32.totalorder %s45, %s48
      %p57 = scmp.eq.s32.totalorder %s15, 7
      %p58 = por %p56, %p57
      %p59 = scmp.ne.s32.totalorder %s48, %s49
      %p60 = scmp.eq.s32.totalorder %s15, 0
      %p61 = por %p59, %p60
      %p62 = scmp.ne.s32.totalorder %s48, %s49
      %p63 = scmp.eq.s32.totalorder %s16, 7
      %p64 = por %p62, %p63
      %p66 = scmp.ne.s32.totalorder %s49, %s65
      %p67 = scmp.eq.s32.totalorder %s16, 0
      %p68 = por %p66, %p67
      %s69 = smul.u32 %s18, 2
      %s70 = sadd.s32 %s69, %s19
      %s71 = smul.u32 %s32, 2
      %s72 = sadd.s32 %s71, %s28
      %s73 = ssub.s32 %s17, %s36
      %s74 = ssub.s32 %s70, %s72
      %s75 = sor.u32 %s73, %s74
      %p76 = scmp.eq.s32.totalorder %s75, 0
      %s78 = sadd.s32 %s77, 1
      %s79 = scalar_select %p76, %s77, %s78
      %p82 = pneg %p76
      %p83 = scmp.eq.s32.totalorder %s10, 7
      %p84 = por %p82, %p83
      %p85 = scmp.ne.s32.totalorder %s77, %s80
      %p86 = scmp.eq.s32.totalorder %s10, 0
      %p87 = por %p85, %p86
      %p88 = scmp.ne.s32.totalorder %s77, %s80
      %p89 = scmp.eq.s32.totalorder %s15, 7
      %p90 = por %p88, %p89
      %p91 = scmp.ne.s32.totalorder %s80, %s81
      %p92 = scmp.eq.s32.totalorder %s15, 0
      %p93 = por %p91, %p92
      %p94 = scmp.ne.s32.totalorder %s80, %s81
      %p95 = scmp.eq.s32.totalorder %s16, 7
      %p96 = por %p94, %p95
      %p98 = scmp.ne.s32.totalorder %s81, %s97
      %p99 = scmp.eq.s32.totalorder %s16, 0
      %p100 = por %p98, %p99
      %s101 = ssub.s32 %s17, %s36
      %s102 = ssub.s32 %s18, %s32
      %s103 = sor.u32 %s101, %s102
      %p104 = scmp.eq.s32.totalorder %s103, 0
      %s106 = sadd.s32 %s105, 1
      %s107 = scalar_select %p104, %s105, %s106
      %p110 = pneg %p104
      %p111 = scmp.eq.s32.totalorder %s10, 7
      %p112 = por %p110, %p111
      %p113 = scmp.ne.s32.totalorder %s105, %s108
      %p114 = scmp.eq.s32.totalorder %s10, 0
      %p115 = por %p113, %p114
      %p116 = scmp.ne.s32.totalorder %s105, %s108
      %p117 = scmp.eq.s32.totalorder %s15, 7
      %p118 = por %p116, %p117
      %p119 = scmp.ne.s32.totalorder %s108, %s109
      %p120 = scmp.eq.s32.totalorder %s15, 0
      %p121 = por %p119, %p120
      %p122 = scmp.ne.s32.totalorder %s108, %s109
      %p123 = scmp.eq.s32.totalorder %s16, 7
      %p124 = por %p122, %p123
      %p126 = scmp.ne.s32.totalorder %s109, %s125
      %p127 = scmp.eq.s32.totalorder %s16, 0
      %p128 = por %p126, %p127
      %s129 = ssub.s32 %s17, %s36
      %s130 = ssub.s32 %s18, %s32
      %s131 = sor.u32 %s129, %s130
      %p132 = scmp.eq.s32.totalorder %s131, 0
      %s134 = sadd.s32 %s133, 1
      %s135 = scalar_select %p132, %s133, %s134
      %p138 = pneg %p132
      %p139 = scmp.eq.s32.totalorder %s10, 7
      %p140 = por %p138, %p139
      %p141 = scmp.ne.s32.totalorder %s133, %s136
      %p142 = scmp.eq.s32.totalorder %s10, 0
      %p143 = por %p141, %p142
      %p144 = scmp.ne.s32.totalorder %s133, %s136
      %p145 = scmp.eq.s32.totalorder %s15, 7
      %p146 = por %p144, %p145
      %p147 = scmp.ne.s32.totalorder %s136, %s137
      %p148 = scmp.eq.s32.totalorder %s15, 0
      %p149 = por %p147, %p148
      %p150 = scmp.ne.s32.totalorder %s136, %s137
      %p151 = scmp.eq.s32.totalorder %s16, 7
      %p152 = por %p150, %p151
      %p154 = scmp.ne.s32.totalorder %s137, %s153
      %p155 = scmp.eq.s32.totalorder %s16, 0
      %p156 = por %p154, %p155
      %p157 = scmp.le.s32.totalorder 1, %s10
      %p158 = scmp.lt.s32.totalorder %s10, 9
      %p159 = pnand %p157, %p158
      %p160 = pneg %p159
      // Predicated region
      $region9: #{tpu_custom_call.1} parent=5 // pred_check
        _
      $region10: #{tpu_custom_call.1} parent=5 // pred_check_branch
        %162 = sbr.rel (%p159) target = $region12
      $region11: #{tpu_custom_call.1} parent=5 // pred_region
        %s163 = ssub.s32 %s10, 1
      $region12: #{tpu_custom_call.1} parent=5 // pred_fallthru
        _
      %p164 = scmp.lt.s32.totalorder %s10, 8
      // Predicated region
      $region13: #{tpu_custom_call.1} parent=5 // pred_check
        %p165 = pneg %p164
      $region14: #{tpu_custom_call.1} parent=5 // pred_check_branch
        %167 = sbr.rel (%p165) target = $region16
      $region15: #{tpu_custom_call.1} parent=5 // pred_region
        // Predicated region
        $region17: #{tpu_custom_call.1} parent=15 // pred_check
          %p168 = pneg %p55
        $region18: #{tpu_custom_call.1} parent=15 // pred_check_branch
          %170 = sbr.rel (%p168) target = $region20
        $region19: #{tpu_custom_call.1} parent=15 // pred_region
          %s171 = sand.u32 %s45, 1
          %s172 = sand.u32 %s45, 1
          %s173 = smul.addr %s172, 24
          %s174 = scalar_lea.vmem [#allocation2], %s173
          %s175 = smul.u32 %s18, 2
          %s176 = sadd.s32 %s175, %s19
          %s177 = smul.addr %s17, 12
          %s178 = sadd.s32 %s176, %s177
          %s179 = smul.addr %s178, 8
          %s180 = scalar_lea.vmem %s0, %s179
          // Predicated region
          $region21: #{tpu_custom_call.1} parent=19 // pred_check
            _
          $region22: #{tpu_custom_call.1} parent=19 // pred_check_branch
            %182 = sbr.rel (0) target = $region24
          $region23: #{tpu_custom_call.1} parent=19 // pred_region
            // Predicated region
            $region25: #{tpu_custom_call.1} parent=23 // pred_check
              _
            $region26: #{tpu_custom_call.1} parent=23 // pred_check_branch
              %184 = sbr.rel (0) target = $region28
            $region27: #{tpu_custom_call.1} parent=23 // pred_region
              // Predicated region
              $region40: #{tpu_custom_call.1} parent=27 // pred_check
                _
              $region41: #{tpu_custom_call.1} parent=27 // pred_check_branch
                %204 = sbr.rel (0) target = $region43
              $region42: #{tpu_custom_call.1} parent=27 // pred_region
                loop: start=0, step=1, limit=1
                $region44: #{tpu_custom_call.1} parent=42 // loop_pre_header
                  _
                $region45: #{tpu_custom_call.1} parent=42 // loop_header
                  %s206 = sphi 0, %s210
                  %p207 = scmp.ge.s32.totalorder %s206, 1
                  %s211 = sphi %s180, %s180
                  %s212 = sphi %s174, %s174
                $region46: #{tpu_custom_call.1} parent=42 // loop_header_branch
                  %209 = sbr.rel (%p207) target = $region50
                $region47: #{tpu_custom_call.1} parent=42 // loop_body
                  %v213 = vld [vmem:[%s211] sm:$0xff]
                  %214 = vst [vmem:[%s212] sm:$0xff] %v213
                  %v215 = vld [vmem:[%s211 + $0x20] sm:$0xff]
                  %216 = vst [vmem:[%s212 + $0x8] sm:$0xff] %v215
                  %v217 = vld [vmem:[%s211 + $0x40] sm:$0xff]
                  %218 = vst [vmem:[%s212 + $0x10] sm:$0xff] %v217
                $region48: #{tpu_custom_call.1} parent=42 // loop_footer
                  %s210 = sadd.s32 1, %s206
                $region49: #{tpu_custom_call.1} parent=42 // loop_footer_branch
                  %205 = sbr.rel target = $region45
                $region50: #{tpu_custom_call.1} parent=42 // loop_exit
                  _
              $region43: #{tpu_custom_call.1} parent=27 // pred_fallthru
                _
              // Predicated region
              $region51: #{tpu_custom_call.1} parent=27 // pred_check
                _
              $region52: #{tpu_custom_call.1} parent=27 // pred_check_branch
                %220 = sbr.rel target = $region54
              $region53: #{tpu_custom_call.1} parent=27 // pred_region
                _
              $region54: #{tpu_custom_call.1} parent=27 // pred_fallthru
                _
            $region28: #{tpu_custom_call.1} parent=23 // pred_fallthru
              _
            // Predicated region
            $region29: #{tpu_custom_call.1} parent=23 // pred_check
              _
            $region30: #{tpu_custom_call.1} parent=23 // pred_check_branch
              %186 = sbr.rel target = $region32
            $region31: #{tpu_custom_call.1} parent=23 // pred_region
              %s188 = ssub.s32 256, 1
              loop: start=0, step=1, limit=1
              $region33: #{tpu_custom_call.1} parent=31 // loop_pre_header
                _
              $region34: #{tpu_custom_call.1} parent=31 // loop_header
                %s190 = sphi 0, %s194
                %p191 = scmp.ge.s32.totalorder %s190, 1
                %s195 = sphi %s180, %s180
                %s196 = sphi %s174, %s174
              $region35: #{tpu_custom_call.1} parent=31 // loop_header_branch
                %193 = sbr.rel (%p191) target = $region39
              $region36: #{tpu_custom_call.1} parent=31 // loop_body
                %v197 = vld [vmem:[%s195] sm:%s188]
                %198 = vst [vmem:[%s196] sm:%s188] %v197
                %v199 = vld [vmem:[%s195 + $0x20] sm:%s188]
                %200 = vst [vmem:[%s196 + $0x8] sm:%s188] %v199
                %v201 = vld [vmem:[%s195 + $0x40] sm:%s188]
                %202 = vst [vmem:[%s196 + $0x10] sm:%s188] %v201
              $region37: #{tpu_custom_call.1} parent=31 // loop_footer
                %s194 = sadd.s32 1, %s190
              $region38: #{tpu_custom_call.1} parent=31 // loop_footer_branch
                %189 = sbr.rel target = $region34
              $region39: #{tpu_custom_call.1} parent=31 // loop_exit
                _
            $region32: #{tpu_custom_call.1} parent=23 // pred_fallthru
              _
          $region24: #{tpu_custom_call.1} parent=19 // pred_fallthru
            _
          %221 = vnop
        $region20: #{tpu_custom_call.1} parent=15 // pred_fallthru
          _
        // Predicated region
        $region55: #{tpu_custom_call.1} parent=15 // pred_check
          %p222 = pneg %p87
        $region56: #{tpu_custom_call.1} parent=15 // pred_check_branch
          %224 = sbr.rel (%p222) target = $region58
        $region57: #{tpu_custom_call.1} parent=15 // pred_region
          %s225 = smul.u32 %s18, 2
          %s226 = sadd.s32 %s225, %s19
          %p227 = scmp.lt.s32.totalorder %s17, 1
          %s228 = scalar_select %p227, %s17, 1
          %p229 = scmp.lt.s32.totalorder %s226, 3
          %s230 = scalar_select %p229, %s226, 3
          %s231 = smul.addr %s228, 4
          %s232 = sadd.s32 %s230, %s231
          %s233 = smul.addr %s232, 8
          %s234 = scalar_lea.vmem %s1, %s233
          %s235 = smul.u32 %s18, 2
          %s236 = sadd.s32 %s235, %s19
        $region58: #{tpu_custom_call.1} parent=15 // pred_fallthru
          _
      $region16: #{tpu_custom_call.1} parent=5 // pred_fallthru
        _
      %p237 = scmp.le.s32.totalorder 1, %s10
      %p238 = scmp.lt.s32.totalorder %s10, 9
      %p239 = pnand %p237, %p238
      %p240 = pneg %p239
      // Predicated region
      $region59: #{tpu_custom_call.1} parent=5 // pred_check
        _
      $region60: #{tpu_custom_call.1} parent=5 // pred_check_branch
        %242 = sbr.rel (%p239) target = $region62
      $region61: #{tpu_custom_call.1} parent=5 // pred_region
        %s243 = ssub.s32 %s10, 1
        %s244 = sand.u32 %s48, 1
        %s245 = sand.u32 %s48, 1
        %s246 = smul.addr %s245, 24
        %s247 = scalar_lea.vmem [#allocation2], %s246
        // Predicated region
        $region63: #{tpu_custom_call.1} parent=61 // pred_check
          %p248 = pneg %p61
        $region64: #{tpu_custom_call.1} parent=61 // pred_check_branch
          %250 = sbr.rel (%p248) target = $region66
        $region65: #{tpu_custom_call.1} parent=61 // pred_region
          _
        $region66: #{tpu_custom_call.1} parent=61 // pred_fallthru
          _
        %s251 = sand.u32 %s48, 1
        %s252 = sand.u32 %s48, 1
        %s253 = smul.addr %s252, 24
        %s254 = scalar_lea.vmem [#allocation2], %s253
        %p255 = pneg %p61
        %p256 = pneg %p58
        %s257 = smul.u32 %s21, 2
        %s258 = sadd.s32 %s257, %s22
        %p259 = scmp.lt.s32.totalorder %s20, 1
        %s260 = scalar_select %p259, %s20, 1
        %p261 = scmp.lt.s32.totalorder %s258, 3
        %s262 = scalar_select %p261, %s258, 3
        %s263 = smul.addr %s260, 4
        %s264 = sadd.s32 %s262, %s263
        %s265 = smul.addr %s264, 8
        %s266 = scalar_lea.vmem %s1, %s265
        %p267 = pneg %p93
        %p268 = pneg %p90
        %p269 = pneg %p121
        %p270 = pneg %p118
        %p271 = scmp.lt.s32.totalorder %s20, 1
        %s272 = scalar_select %p271, %s20, 1
        %p273 = scmp.lt.s32.totalorder %s21, 1
        %s274 = scalar_select %p273, %s21, 1
        %s275 = smul.addr %s272, 2
        %s276 = sadd.s32 %s274, %s275
        %s277 = smul.addr %s276, 4
        %s278 = scalar_lea.vmem %s2, %s277
        %p279 = pneg %p149
        %p280 = pneg %p146
        %p281 = scmp.lt.s32.totalorder %s20, 1
        %s282 = scalar_select %p281, %s20, 1
        %p283 = scmp.lt.s32.totalorder %s21, 1
        %s284 = scalar_select %p283, %s21, 1
        %s285 = smul.addr %s282, 2
        %s286 = sadd.s32 %s284, %s285
        %s287 = smul.addr %s286, 4
        %s288 = scalar_lea.vmem %s3, %s287
        %s289 = smul.u32 %s21, 2
        %s290 = sadd.s32 %s289, %s22
        %s291 = smul.u32 %s21, 2
        %s292 = sadd.s32 %s291, %s22
        %p293 = scmp.lt.s32.totalorder %s20, 1
        %s294 = scalar_select %p293, %s20, 1
        %p295 = scmp.lt.s32.totalorder %s292, 3
        %s296 = scalar_select %p295, %s292, 3
        %s297 = smul.addr %s294, 4
        %s298 = sadd.s32 %s296, %s297
        %s299 = smul.addr %s298, 8
        %s300 = scalar_lea.vmem %s1, %s299
        %s301 = smul.u32 %s21, 2
        %s302 = sadd.s32 %s301, %s22
        %p303 = scmp.lt.s32.totalorder %s20, 1
        %s304 = scalar_select %p303, %s20, 1
        %p305 = scmp.lt.s32.totalorder %s21, 1
        %s306 = scalar_select %p305, %s21, 1
        %s307 = smul.addr %s304, 2
        %s308 = sadd.s32 %s306, %s307
        %s309 = smul.addr %s308, 4
        %s310 = scalar_lea.vmem %s2, %s309
        %p311 = scmp.lt.s32.totalorder %s20, 1
        %s312 = scalar_select %p311, %s20, 1
        %p313 = scmp.lt.s32.totalorder %s21, 1
        %s314 = scalar_select %p313, %s21, 1
        %s315 = smul.addr %s312, 2
        %s316 = sadd.s32 %s314, %s315
        %s317 = smul.addr %s316, 4
        %s318 = scalar_lea.vmem %s3, %s317
        %p319 = scmp.eq.s32.totalorder %s22, 0
        // Predicated region
        $region67: #{tpu_custom_call.1} parent=61 // pred_check
          %p320 = pneg %p319
        $region68: #{tpu_custom_call.1} parent=61 // pred_check_branch
          %322 = sbr.rel (%p320) target = $region70
        $region69: #{tpu_custom_call.1} parent=61 // pred_region
          %vm323 = vcmask 124928
          %324 = vst.msk [vmem:[%s310] sm:$0x7] %vm323, 0.0
          %325 = vst.msk [vmem:[%s318] sm:$0x7] %vm323, 0.0
        $region70: #{tpu_custom_call.1} parent=61 // pred_fallthru
          _
        %v326 = vld [vmem:[%s300] sm:$0xff]
        %v327 = vld [vmem:[%s247] sm:$0xff]
        %vm328 = vcmp.eq.s32.totalorder %v326, 0
        %v329 = vsel %vm328, 1, 0
        %v330 = vcvt.s32.f32 %v329
        %v331 = vsel %vm328, %v327, 0.0
        %vm332 = vcmask 130048
        %v333 = vsel %vm332, %v331, 0.0
        %v334 = vrot.slane %v333, 4
        %v335 = vadd.f32 %v333, %v334
        %v336 = vrot.slane %v335, 2
        %v337 = vadd.f32 %v335, %v336
        %v338 = vrot.slane %v337, 1
        %v339 = vadd.f32 %v337, %v338
        %v340 = vadd.f32 %v327, %v330
        %v341 = vsel %vm332, %v340, 0.0
        %v342 = vrot.slane %v341, 4
        %v343 = vadd.f32 %v341, %v342
        %v344 = vrot.slane %v343, 2
        %v345 = vadd.f32 %v343, %v344
        %v346 = vrot.slane %v345, 1
        %v347 = vadd.f32 %v345, %v346
        %s348 = scalar_lea.vmem %s247, 8 [#allocation2]
        %v349 = vld [vmem:[%s348] sm:$0xff]
        %vm350 = vcmp.eq.s32.totalorder %v326, 1
        %v351 = vsel %vm350, 1, 0
        %v352 = vcvt.s32.f32 %v351
        %v353 = vsel %vm350, %v349, 0.0
        %v354 = vsel %vm332, %v353, 0.0
        %v355 = vrot.slane %v354, 4
        %v356 = vadd.f32 %v354, %v355
        %v357 = vrot.slane %v356, 2
        %v358 = vadd.f32 %v356, %v357
        %v359 = vrot.slane %v358, 1
        %v360 = vadd.f32 %v358, %v359
        %v361 = vadd.f32 %v349, %v352
        %v362 = vsel %vm332, %v361, 0.0
        %v363 = vrot.slane %v362, 4
        %v364 = vadd.f32 %v362, %v363
        %v365 = vrot.slane %v364, 2
        %v366 = vadd.f32 %v364, %v365
        %v367 = vrot.slane %v366, 1
        %v368 = vadd.f32 %v366, %v367
        %s369 = scalar_lea.vmem %s247, 16 [#allocation2]
        %v370 = vld [vmem:[%s369] sm:$0xff]
        %vm371 = vcmp.eq.s32.totalorder %v326, 2
        %v372 = vsel %vm371, 1, 0
        %v373 = vcvt.s32.f32 %v372
        %v374 = vsel %vm371, %v370, 0.0
        %v375 = vsel %vm332, %v374, 0.0
        %v376 = vrot.slane %v375, 4
        %v377 = vadd.f32 %v375, %v376
        %v378 = vrot.slane %v377, 2
        %v379 = vadd.f32 %v377, %v378
        %v380 = vrot.slane %v379, 1
        %v381 = vadd.f32 %v379, %v380
        %v382 = vadd.f32 %v370, %v373
        %v383 = vsel %vm332, %v382, 0.0
        %v384 = vrot.slane %v383, 4
        %v385 = vadd.f32 %v383, %v384
        %v386 = vrot.slane %v385, 2
        %v387 = vadd.f32 %v385, %v386
        %v388 = vrot.slane %v387, 1
        %v389 = vadd.f32 %v387, %v388
        %v390 = vld [vmem:[%s310] sm:$0x7]
        %vm391 = vcmask 1040384
        %v392 = vsel %vm391, %v339, %v360
        %vm393 = vcmask 1041408
        %v394 = vsel %vm393, %v392, %v381
        %v395 = vadd.f32 %v390, %v394
        %vm396 = vcmask 124928
        %397 = vst.msk [vmem:[%s310] sm:$0x7] %vm396, %v395
        %v398 = vld [vmem:[%s318] sm:$0x7]
        %v399 = vsel %vm391, %v347, %v368
        %v400 = vsel %vm393, %v399, %v389
        %v401 = vadd.f32 %v398, %v400
        %402 = vst.msk [vmem:[%s318] sm:$0x7] %vm396, %v401
        %p403 = scmp.lt.s32.totalorder %s20, 1
        %s404 = scalar_select %p403, %s20, 1
        %p405 = scmp.lt.s32.totalorder %s21, 1
        %s406 = scalar_select %p405, %s21, 1
        %s407 = smul.addr %s404, 2
        %s408 = sadd.s32 %s406, %s407
        %s409 = smul.addr %s408, 4
        %s410 = scalar_lea.vmem %s2, %s409
        %p411 = scmp.lt.s32.totalorder %s20, 1
        %s412 = scalar_select %p411, %s20, 1
        %p413 = scmp.lt.s32.totalorder %s21, 1
        %s414 = scalar_select %p413, %s21, 1
        %s415 = smul.addr %s412, 2
        %s416 = sadd.s32 %s414, %s415
        %s417 = smul.addr %s416, 4
        %s418 = scalar_lea.vmem %s3, %s417
        // Predicated region
        $region71: #{tpu_custom_call.1} parent=61 // pred_check
          %p419 = pneg %p118
        $region72: #{tpu_custom_call.1} parent=61 // pred_check_branch
          %421 = sbr.rel (%p419) target = $region74
        $region73: #{tpu_custom_call.1} parent=61 // pred_region
          _
        $region74: #{tpu_custom_call.1} parent=61 // pred_fallthru
          _
        // Predicated region
        $region75: #{tpu_custom_call.1} parent=61 // pred_check
          %p422 = pneg %p146
        $region76: #{tpu_custom_call.1} parent=61 // pred_check_branch
          %424 = sbr.rel (%p422) target = $region78
        $region77: #{tpu_custom_call.1} parent=61 // pred_region
          _
        $region78: #{tpu_custom_call.1} parent=61 // pred_fallthru
          _
      $region62: #{tpu_custom_call.1} parent=5 // pred_fallthru
        _
      %p425 = scmp.le.s32.totalorder 2, %s10
      // Predicated region
      $region79: #{tpu_custom_call.1} parent=5 // pred_check
        %p426 = pneg %p425
      $region80: #{tpu_custom_call.1} parent=5 // pred_check_branch
        %428 = sbr.rel (%p426) target = $region82
      $region81: #{tpu_custom_call.1} parent=5 // pred_region
        %s429 = ssub.s32 %s10, 2
        // Predicated region
        $region83: #{tpu_custom_call.1} parent=81 // pred_check
          %p430 = pneg %p124
        $region84: #{tpu_custom_call.1} parent=81 // pred_check_branch
          %432 = sbr.rel (%p430) target = $region86
        $region85: #{tpu_custom_call.1} parent=81 // pred_region
          %p433 = scmp.lt.s32.totalorder %s23, 1
          %s434 = scalar_select %p433, %s23, 1
          %p435 = scmp.lt.s32.totalorder %s24, 1
          %s436 = scalar_select %p435, %s24, 1
          %s437 = smul.addr %s434, 2
          %s438 = sadd.s32 %s436, %s437
          %s439 = smul.addr %s438, 4
          %s440 = scalar_lea.vmem %s2, %s439
        $region86: #{tpu_custom_call.1} parent=81 // pred_fallthru
          _
        // Predicated region
        $region87: #{tpu_custom_call.1} parent=81 // pred_check
          %p441 = pneg %p152
        $region88: #{tpu_custom_call.1} parent=81 // pred_check_branch
          %443 = sbr.rel (%p441) target = $region90
        $region89: #{tpu_custom_call.1} parent=81 // pred_region
          %p444 = scmp.lt.s32.totalorder %s23, 1
          %s445 = scalar_select %p444, %s23, 1
          %p446 = scmp.lt.s32.totalorder %s24, 1
          %s447 = scalar_select %p446, %s24, 1
          %s448 = smul.addr %s445, 2
          %s449 = sadd.s32 %s447, %s448
          %s450 = smul.addr %s449, 4
          %s451 = scalar_lea.vmem %s3, %s450
        $region90: #{tpu_custom_call.1} parent=81 // pred_fallthru
          _
      $region82: #{tpu_custom_call.1} parent=5 // pred_fallthru
        _
    $region6: #{tpu_custom_call.1} parent=1 // loop_footer
      %s14 = sadd.s32 1, %s10
    $region7: #{tpu_custom_call.1} parent=1 // loop_footer_branch
      %9 = sbr.rel target = $region3
    $region8: #{tpu_custom_call.1} parent=1 // loop_exit
      _

</llo_original>
